<compile_context>
chip_gen: v5e
topology: v5e:2x2
jax: 0.10.0
libtpu: 0.0.40
codegen_flags: <defaults>
</compile_context>

<pallas_src>
import math

import jax
import jax.numpy as jnp
from jax.experimental import pallas as pl
from jax.experimental.pallas import tpu as pltpu

_LANE = 128


def _diag_kernel(x_ref, w_ref, o_ref):
    # x_ref: (tb, tf), w_ref: (1, tf) broadcast over rows.
    # Multiply happens in the promoted dtype (no pre-downcast of the weight);
    # cast only on store.
    o_ref[...] = (x_ref[...] * w_ref[...]).astype(o_ref.dtype)


def _pallas_diag_2d(x2, w2, out_dtype):
    """Elementwise x2 * w2 (w2 row-broadcast). x2: (N, Ff), w2: (1, Ff), Ff % 128 == 0."""
    N, Ff = x2.shape
    xi = jnp.dtype(x2.dtype).itemsize
    oi = jnp.dtype(out_dtype).itemsize
    wi = jnp.dtype(w2.dtype).itemsize
    itemsize = max(xi, oi)
    # Sublane multiple for the narrowest participating dtype (8 f32, 16 bf16, ...).
    sublane = max(8, 32 // min(xi, oi))

    target_bytes = 8 << 20  # ~8 MiB blocks: ~2.5us of HBM traffic on v7x, step
                            # overhead (~0.35us) stays small; fine on v6e/v5e too.

    # Tile F only if a single minimum-height (sublane, Ff) block would blow the budget.
    if sublane * Ff * itemsize > target_bytes:
        tf = max(_LANE, (target_bytes // (sublane * itemsize)) // _LANE * _LANE)
        tf = min(tf, Ff)
    else:
        tf = Ff

    # Batch tile: within the byte budget, but capped so the grid has >= ~4 steps
    # when B allows it (pipelining + even work split across v7x's 2 TCs).
    min_steps = 4
    if N <= sublane:
        tb = N  # full-extent block: always layout-legal
    else:
        tb_budget = (target_bytes // max(1, tf * itemsize)) // sublane * sublane
        tb_steps = (N // min_steps) // sublane * sublane
        tb = max(sublane, min(tb_budget, tb_steps))

    grid = (pl.cdiv(N, tb), pl.cdiv(Ff, tf))

    # VMEM budget derived from the actual (double-buffered) block sizes + slack,
    # clamped comfortably under v7x's 64 MiB/TC physical VMEM.
    blk_bytes = tb * tf * xi + tb * tf * oi + tf * wi
    vmem_limit = 2 * blk_bytes + (4 << 20)
    vmem_limit = int(min(max(vmem_limit, 16 << 20), 60 << 20))

    out2 = pl.pallas_call(
        _diag_kernel,
        out_shape=jax.ShapeDtypeStruct((N, Ff), out_dtype),
        grid_spec=pltpu.PrefetchScalarGridSpec(
            num_scalar_prefetch=0,
            grid=grid,
            in_specs=[
                pl.BlockSpec((tb, tf), lambda i, j: (i, j)),  # x tile
                pl.BlockSpec((1, tf), lambda i, j: (0, j)),   # weight row (F-tiled)
            ],
            out_specs=pl.BlockSpec((tb, tf), lambda i, j: (i, j)),
        ),
        compiler_params=pltpu.CompilerParams(
            dimension_semantics=("parallel", "parallel"),
            vmem_limit_bytes=vmem_limit,
        ),
        cost_estimate=pl.CostEstimate(
            flops=N * Ff,
            transcendentals=0,
            bytes_accessed=N * Ff * (xi + oi) + Ff * wi,
        ),
    )(x2, w2)
    return out2


def diag_layer(x, weight, *, min_pallas_bytes=1 << 20):
    """x: (B, num_et, in_dim), weight: (num_et, in_dim) -> x * weight (broadcast over B)."""
    B, E, D = x.shape
    assert weight.shape == (E, D)
    F = E * D
    out_dtype = jnp.result_type(x.dtype, weight.dtype)

    def _jnp_ref(xs):
        return (xs * weight[None, :, :]).astype(out_dtype)

    total_bytes = B * F * (jnp.dtype(x.dtype).itemsize + jnp.dtype(out_dtype).itemsize)
    if total_bytes < min_pallas_bytes or B == 0:
        # Tiny problem: a pallas_call is pure fixed overhead and blocks XLA fusion.
        return _jnp_ref(x)

    # Fold k batch rows into the lane dim so the trailing dim is a wide multiple
    # of 128 (unmasked, lane-dense stores). k == 1 when F is already a wide
    # multiple of 128.
    if F % _LANE == 0:
        k = 1
    else:
        k = _LANE // math.gcd(F, _LANE)
    while k * F < 512 and 2 * k <= B:
        k *= 2

    nb = B // k
    if nb == 0:
        # Not enough rows to fold into a legal lane-dense layout.
        return _jnp_ref(x)

    Bm = nb * k
    Ff = k * F
    x_main = x[:Bm].reshape(nb, Ff)
    w_row = weight.reshape(1, F)
    w2 = jnp.tile(w_row, (1, k)) if k > 1 else w_row

    out_main = _pallas_diag_2d(x_main, w2, out_dtype).reshape(Bm, E, D)
    if Bm == B:
        return out_main
    # Remainder rows (< k of them): negligible traffic, plain jnp.
    out_tail = _jnp_ref(x[Bm:])
    return jnp.concatenate([out_main, out_tail], axis=0)


if __name__ == "__main__":
    key = jax.random.PRNGKey(0)
    kw, kw3, kx1, kx2, kx3, kx4, kx5 = jax.random.split(key, 7)

    num_et, in_dim = 4, 32  # F = 128

    # Deterministic parameter init mirroring reset_parameters():
    # weight ~ Normal(0, 1/sqrt(in_dim))
    weight = (jax.random.normal(kw, (num_et, in_dim), dtype=jnp.float32)
              / jnp.sqrt(jnp.float32(in_dim)))

    # 1) Small f32 input; force the Pallas path (lane-fold to 512-wide blocks).
    x1 = jax.random.normal(kx1, (8, num_et, in_dim), dtype=jnp.float32)
    o1 = jax.block_until_ready(diag_layer(x1, weight, min_pallas_bytes=0))
    assert o1.shape == x1.shape
    assert jnp.allclose(o1, x1 * weight[None, :, :], atol=1e-6, rtol=1e-6)

    # 2) Batch not a multiple of the fold factor -> Pallas main + jnp tail.
    x2 = jax.random.normal(kx2, (10, num_et, in_dim), dtype=jnp.float32)
    o2 = jax.block_until_ready(diag_layer(x2, weight, min_pallas_bytes=0))
    assert jnp.allclose(o2, x2 * weight[None, :, :], atol=1e-6, rtol=1e-6)

    # 3) F not a multiple of 128 (E=3, D=20 -> F=60): lane-fold path (k=32).
    e3, d3 = 3, 20
    w3 = (jax.random.normal(kw3, (e3, d3), dtype=jnp.float32)
          / jnp.sqrt(jnp.float32(d3)))
    x3 = jax.random.normal(kx3, (70, e3, d3), dtype=jnp.float32)
    o3 = jax.block_until_ready(diag_layer(x3, w3, min_pallas_bytes=0))
    assert jnp.allclose(o3, x3 * w3[None, :, :], atol=1e-6, rtol=1e-6)

    # 4) Mixed dtype: bf16 activations, f32 weight -> multiply in f32 (matches torch).
    x4 = jax.random.normal(kx4, (16, num_et, in_dim), dtype=jnp.float32).astype(jnp.bfloat16)
    o4 = jax.block_until_ready(diag_layer(x4, weight, min_pallas_bytes=0))
    assert o4.dtype == jnp.float32
    ref4 = x4.astype(jnp.float32) * weight[None, :, :]
    assert jnp.allclose(o4, ref4, atol=1e-6, rtol=1e-6)

    # 5) Larger batch to exercise the multi-step pipelined grid (>= 4 steps).
    x5 = jax.random.normal(kx5, (4096, num_et, in_dim), dtype=jnp.float32)
    o5 = jax.block_until_ready(diag_layer(x5, weight))
    assert jnp.allclose(o5, x5 * weight[None, :, :], atol=1e-6, rtol=1e-6)

    # 6) Default small-problem jnp fallback still matches.
    o6 = jax.block_until_ready(diag_layer(x1, weight))
    assert jnp.allclose(o6, x1 * weight[None, :, :], atol=1e-6, rtol=1e-6)

    print("KERNEL_OK")
</pallas_src>

<mosaic_0001>
module attributes {stable_mosaic.version = 11 : i64} {
  func.func @_diag_kernel(%arg0: i32, %arg1: i32, %arg2: memref<2x512xf32, #tpu.memory_space<vmem>>, %arg3: memref<1x512xf32, #tpu.memory_space<vmem>>, %arg4: memref<2x512xf32, #tpu.memory_space<vmem>>) attributes {dimension_semantics = [#tpu.dimension_semantics<parallel>, #tpu.dimension_semantics<parallel>], iteration_bounds = array<i64: 1, 1>, scalar_prefetch = 0 : i64, scratch_operands = 0 : i64, tpu.core_type = #tpu.core_type<tc>, window_params = [{transform_indices = @transform_0, window_bounds = array<i64: 2, 512>}, {transform_indices = @transform_1, window_bounds = array<i64: 1, 512>}, {transform_indices = @transform_2, window_bounds = array<i64: 2, 512>}]} {
    %c0 = arith.constant 0 : index
    %c0_0 = arith.constant 0 : index
    %0 = vector.load %arg2[%c0, %c0_0] : memref<2x512xf32, #tpu.memory_space<vmem>>, vector<2x512xf32>
    %c0_1 = arith.constant 0 : index
    %c0_2 = arith.constant 0 : index
    %1 = vector.load %arg3[%c0_1, %c0_2] : memref<1x512xf32, #tpu.memory_space<vmem>>, vector<1x512xf32>
    %2 = vector.broadcast %1 : vector<1x512xf32> to vector<2x512xf32>
    %3 = arith.mulf %0, %2 : vector<2x512xf32>
    %c0_3 = arith.constant 0 : index
    %c0_4 = arith.constant 0 : index
    %4 = vector.load %arg4[%c0_3, %c0_4] : memref<2x512xf32, #tpu.memory_space<vmem>>, vector<2x512xf32>
    tpu.vector_store %arg4[%c0_3, %c0_4], %3 {strides = array<i32>} : memref<2x512xf32, #tpu.memory_space<vmem>>, vector<2x512xf32>,
    return
  }
  func.func @transform_0(%arg0: i32, %arg1: i32) -> (i32, i32) {
    %c0_i32 = arith.constant 0 : i32
    return %arg0, %arg1 : i32, i32
  }
  func.func @transform_1(%arg0: i32, %arg1: i32) -> (i32, i32) {
    %c0_i32 = arith.constant 0 : i32
    %c0_i32_0 = arith.constant 0 : i32
    return %c0_i32, %arg1 : i32, i32
  }
  func.func @transform_2(%arg0: i32, %arg1: i32) -> (i32, i32) {
    %c0_i32 = arith.constant 0 : i32
    return %arg0, %arg1 : i32, i32
  }
}

</mosaic_0001>

<llo_original>
// kernel: tpu_custom_call.1
$region0: #{tpu_custom_call.1}
  #allocation0 [shape = 'u32[]', space=smem, size = 0x4, offset = 0x4, fixed_abs, tag = 'smem constant byte address 0x4 - core index']
  #allocation1 [shape = 'u32[72,128]{1,0:T(1,128)}', space=vmem, size = 0x9000, scoped, tag = 'internal scratch']
  %s0 = inlined_call_operand.hbm [shape: f32[2,512], index: 0, kind: input, shape index: {}]
  %s1 = inlined_call_operand.hbm [shape: f32[1,512], index: 1, kind: input, shape index: {}]
  %s2 = inlined_call_operand.hbm [shape: f32[2,512], index: 2, kind: output, shape index: {}]
  %s3 = sld [smem:[#allocation0]]
  $region26: #{tpu_custom_call.1} parent=0
    _
  %s5 = ssub.s32 1, %s3
  %s6 = scalar_select 0, %s5, %s3
  $region1: #{tpu_custom_call.1} parent=0
    #allocation2 [shape = 'u8[4096]{0}', space=vmem, size = 0x1000, scoped, tag = 'input window, operand 0, single buffered']
    #allocation3 [shape = 's32[1]{0}', space=sflag, size = 0x4, scoped, tag = 'scoped memory for tpu_custom_call.1']
    #allocation4 [shape = 's32[1]{0}', space=sflag, size = 0x4, scoped, tag = 'scoped memory for tpu_custom_call.1']
    #allocation5 [shape = 'u8[2048]{0}', space=vmem, size = 0x800, scoped, tag = 'input window, operand 1, single buffered']
    #allocation6 [shape = 's32[1]{0}', space=sflag, size = 0x4, scoped, tag = 'scoped memory for tpu_custom_call.1']
    #allocation7 [shape = 'u8[4096]{0}', space=vmem, size = 0x1000, scoped, tag = 'output window, operand 0, single buffered']
    %7 = vsyncpa [#allocation3], 0
    %8 = vsyncpa [#allocation6], 0
    %9 = vsyncpa [#allocation4], 0
    // Predicated region
    $region2: #{tpu_custom_call.1} parent=1 // pred_check
      _
    $region3: #{tpu_custom_call.1} parent=1 // pred_check_branch
      %11 = sbr.rel (0) target = $region5
    $region4: #{tpu_custom_call.1} parent=1 // pred_region
      %13 = vsyncadd [#allocation3], 0
      %s15 = sshll.u32 %s0, 4
      %s16 = int_to_ptr.hbm [resolvable:$true] %s15
      %s17 = sshll.u32 [#allocation2], 4
      %s18 = int_to_ptr.vmem [resolvable:$true] %s17
      %20 = dma.hbm_to_vmem [thread:$0]  %s16, 128, %s18, [#allocation3]
    $region5: #{tpu_custom_call.1} parent=1 // pred_fallthru
      _
    // Predicated region
    $region6: #{tpu_custom_call.1} parent=1 // pred_check
      _
    $region7: #{tpu_custom_call.1} parent=1 // pred_check_branch
      %22 = sbr.rel (0) target = $region9
    $region8: #{tpu_custom_call.1} parent=1 // pred_region
      %24 = vsyncadd [#allocation6], 0
      %s26 = sshll.u32 %s1, 4
      %s27 = int_to_ptr.hbm [resolvable:$true] %s26
      %s28 = sshll.u32 [#allocation5], 4
      %s29 = int_to_ptr.vmem [resolvable:$true] %s28
      %31 = dma.hbm_to_vmem [thread:$0]  %s27, 64, %s29, [#allocation6]
    $region9: #{tpu_custom_call.1} parent=1 // pred_fallthru
      _
    // Predicated region
    $region10: #{tpu_custom_call.1} parent=1 // pred_check
      _
    $region11: #{tpu_custom_call.1} parent=1 // pred_check_branch
      %33 = sbr.rel (0) target = $region13
    $region12: #{tpu_custom_call.1} parent=1 // pred_region
      %35 = dma.done [#allocation3], 128
    $region13: #{tpu_custom_call.1} parent=1 // pred_fallthru
      _
    // Predicated region
    $region14: #{tpu_custom_call.1} parent=1 // pred_check
      _
    $region15: #{tpu_custom_call.1} parent=1 // pred_check_branch
      %37 = sbr.rel (0) target = $region17
    $region16: #{tpu_custom_call.1} parent=1 // pred_region
      %39 = dma.done [#allocation6], 64
    $region17: #{tpu_custom_call.1} parent=1 // pred_fallthru
      _
    %v40 = vld [vmem:[#allocation2] sm:$0xff]
    %v41 = vld [vmem:[#allocation5] sm:$0xf]
    %v43 = vperm.slane %v41, 0
    %v44 = vperm.slane %v41, 1
    %v45 = vperm.slane %v41, 2
    %v46 = vperm.slane %v41, 3
    %v47 = vrot.slane %v44, 6
    %v48 = vrot.slane %v45, 4
    %v49 = vrot.slane %v46, 2
    %vm50 = vcmask 1041408
    %v51 = vsel %vm50, %v43, %v47
    %vm52 = vcmask 1045508
    %v53 = vsel %vm52, %v48, %v49
    %vm54 = vcmask 1043456
    %v55 = vsel %vm54, %v51, %v53
    %v57 = vmul.f32 %v40, %v55
    %58 = vst [vmem:[#allocation7] sm:$0xff] %v57
    // Predicated region
    $region18: #{tpu_custom_call.1} parent=1 // pred_check
      _
    $region19: #{tpu_custom_call.1} parent=1 // pred_check_branch
      %60 = sbr.rel (0) target = $region21
    $region20: #{tpu_custom_call.1} parent=1 // pred_region
      %62 = vsyncadd [#allocation4], 0
      %s64 = sshll.u32 [#allocation7], 4
      %s65 = int_to_ptr.vmem [resolvable:$true] %s64
      %s66 = sshll.u32 %s2, 4
      %s67 = int_to_ptr.hbm [resolvable:$true] %s66
      %69 = dma.vmem_to_hbm [thread:$0]  %s65, 128, %s67, [#allocation4]
    $region21: #{tpu_custom_call.1} parent=1 // pred_fallthru
      _
    // Predicated region
    $region22: #{tpu_custom_call.1} parent=1 // pred_check
      _
    $region23: #{tpu_custom_call.1} parent=1 // pred_check_branch
      %71 = sbr.rel (0) target = $region25
    $region24: #{tpu_custom_call.1} parent=1 // pred_region
      %73 = dma.done [#allocation4], 128
    $region25: #{tpu_custom_call.1} parent=1 // pred_fallthru
      _
    %74 = vsyncpa [#allocation3], 1
    %75 = vsyncpa [#allocation6], 1
    %76 = vsyncpa [#allocation4], 1

</llo_original>
